<compile_context>
chip_gen: v7x
topology: tpu7x:2x2x1
jax: 0.10.0
libtpu: 0.0.40
codegen_flags: <defaults>
</compile_context>

<pallas_src>
import functools
import itertools

import numpy as np
import jax
import jax.numpy as jnp
from jax import lax
from jax.experimental import pallas as pl
from jax.experimental.pallas import tpu as pltpu


def _round_up(x, m):
    return ((x + m - 1) // m) * m


def _pad_to(x, shape, value=0.0):
    pads = [(0, s - d) for d, s in zip(x.shape, shape)]
    if all(p == (0, 0) for p in pads):
        return x
    return jnp.pad(x, pads, constant_values=value)


# ----------------------------------------------------------------------------
# Pallas kernel: accumulate p @ t.T over pixel tiles (psum rides along in the
# reserved all-ones column), then build the (TN, M_pad) cost block at k==last.
# ----------------------------------------------------------------------------
_NT_DIMS = (((1,), (1,)), ((), ()))   # contract the shared last (pixel/lane) axis


def _cost_kernel(logits_ref, onehot_ref, tsum_ref, pmask_ref, tmask_ref,
                 out_ref, acc_dot,
                 *, w_class, w_mask, w_dice, num_pixels):
    # logits_ref : (TN, C)      f32     onehot_ref : (C, M_pad)   f32
    # tsum_ref   : (1, M_pad)   f32     pmask_ref  : (TN, TP)     f32
    # tmask_ref  : (M_pad, TP)  bf16 (0/1; last row all-ones over real pixels)
    # out_ref    : (TN, M_pad)  f32     acc_dot    : (TN, M_pad)  f32 scratch
    k = pl.program_id(2)

    @pl.when(k == 0)
    def _init():
        acc_dot[...] = jnp.zeros_like(acc_dot)

    # sigmoid in f32 (safe on v5e); bf16 cast only for the MXU operand.
    # TODO(synk): on v6e/v7x a bf16 sigmoid halves vreg/EUP cost; gated per-chip.
    p = jax.nn.sigmoid(pmask_ref[...])                               # (TN, TP) f32
    acc_dot[...] += lax.dot_general(p.astype(jnp.bfloat16), tmask_ref[...],
                                    _NT_DIMS,
                                    preferred_element_type=jnp.float32)

    @pl.when(k == pl.num_programs(2) - 1)
    def _finalize():
        dot_pt = acc_dot[...]                       # (TN, M_pad); last col = sum(p)
        psum = dot_pt[:, -1:]                       # (TN, 1) via the all-ones GT row
        denom = psum + tsum_ref[...]                # (TN, M_pad)

        # cost_mask = mean(-(p*t)) + mean(-((1-p)*(1-t)))
        #           = -(2*p@t.T + P - psum - tsum) / P
        cost_mask = -(2.0 * dot_pt + num_pixels - denom) * (1.0 / num_pixels)
        # cost_dice = 1 - (2*p@t.T + 1) / (psum + tsum + 1)
        cost_dice = 1.0 - (2.0 * dot_pt + 1.0) * pl.reciprocal(denom + 1.0,
                                                               approx=True)
        # cost_class = -logits[:, labels]  (gather expressed as a tiny matmul)
        cost_class = -jnp.dot(logits_ref[...], onehot_ref[...],
                              preferred_element_type=jnp.float32)

        out_ref[...] = (w_class * cost_class + w_mask * cost_mask
                        + w_dice * cost_dice).astype(out_ref.dtype)


# ----------------------------------------------------------------------------
# Batched cost-matrix computation (one pallas_call for all active images).
# ----------------------------------------------------------------------------
@functools.partial(jax.jit,
                   static_argnames=("num_pixels", "w_class", "w_mask", "w_dice"))
def _compute_cost_matrices(logits, pmask, tmask, onehot, tsum, *,
                           num_pixels, w_class, w_mask, w_dice):
    """logits (Ba,N,C) f32; pmask (Ba,N,P) f32; tmask (Ba,M_pad,P) bf16;
    onehot (Ba,C,M_pad) f32; tsum (Ba,1,M_pad) f32 -> (Ba, N_pad, M_pad) f32."""
    Ba, N, Ccls = logits.shape
    M_pad = tmask.shape[1]
    P = pmask.shape[-1]

    # ---- row tiles: multiple of 16, aim for >=2 "parallel" tiles (v7x) ------
    N_pad = _round_up(N, 16)
    if N_pad <= 16:
        TN = N_pad
    elif N_pad <= 256:
        TN = _round_up(N_pad // 2, 16)
        N_pad = _round_up(N_pad, TN)
    else:
        TN = 128
        N_pad = _round_up(N_pad, TN)
    n_tiles = N_pad // TN

    # ---- pixel tiles: as large as possible (<=8192), minimal padding --------
    TP_CAP = 8192
    p_tiles = -(-P // TP_CAP)
    TP = _round_up(-(-P // p_tiles), 128)
    P_pad = TP * p_tiles

    logits_p = _pad_to(logits, (Ba, N_pad, Ccls))
    pmask_p = _pad_to(pmask, (Ba, N_pad, P_pad))      # pad rows/pixels with 0;
    tmask_p = _pad_to(tmask, (Ba, M_pad, P_pad))      # gt (incl. ones row) padded 0
                                                      # -> padding contributes 0.

    kernel = functools.partial(_cost_kernel,
                               w_class=float(w_class), w_mask=float(w_mask),
                               w_dice=float(w_dice), num_pixels=float(num_pixels))

    # double-buffered block working set (bytes) + headroom; covers v5e's 16 MiB
    # default while staying well inside v7x's 64 MiB physical VMEM.
    vmem_bytes = (2 * (TN * TP * 4 + M_pad * TP * 2 + TN * Ccls * 4
                       + Ccls * M_pad * 4 + M_pad * 4 + TN * M_pad * 4)
                  + TN * M_pad * 4)
    vmem_limit = int(min(max(vmem_bytes * 3 // 2 + (2 << 20), 16 << 20), 40 << 20))

    out = pl.pallas_call(
        kernel,
        out_shape=jax.ShapeDtypeStruct((Ba, N_pad, M_pad), jnp.float32),
        grid_spec=pltpu.PrefetchScalarGridSpec(
            num_scalar_prefetch=0,
            grid=(Ba, n_tiles, p_tiles),
            in_specs=[
                pl.BlockSpec((None, TN, Ccls), lambda b, i, k: (b, i, 0)),   # logits
                pl.BlockSpec((None, Ccls, M_pad), lambda b, i, k: (b, 0, 0)),  # one-hot^T
                pl.BlockSpec((None, 1, M_pad), lambda b, i, k: (b, 0, 0)),     # sum(t)
                pl.BlockSpec((None, TN, TP), lambda b, i, k: (b, i, k)),       # pred masks
                pl.BlockSpec((None, M_pad, TP), lambda b, i, k: (b, 0, k)),    # gt masks
            ],
            out_specs=pl.BlockSpec((None, TN, M_pad), lambda b, i, k: (b, i, 0)),
            scratch_shapes=[
                pltpu.VMEM((TN, M_pad), jnp.float32),   # p @ t.T accumulator
            ],
        ),
        compiler_params=pltpu.CompilerParams(
            dimension_semantics=("parallel", "parallel", "arbitrary"),
            vmem_limit_bytes=vmem_limit),
    )(logits_p, onehot, tsum, pmask_p, tmask_p)
    return out


# ----------------------------------------------------------------------------
# Host-side exact linear sum assignment (Jonker–Volgenant style, O(n^3)).
# ----------------------------------------------------------------------------
def _linear_sum_assignment(cost):
    """Same output convention as scipy.optimize.linear_sum_assignment."""
    cost = np.asarray(cost, dtype=np.float64)
    if cost.size == 0:
        return np.array([], dtype=np.int64), np.array([], dtype=np.int64)
    transposed = cost.shape[0] > cost.shape[1]
    if transposed:
        cost = cost.T
    n, m = cost.shape                        # n <= m
    u = np.zeros(n)
    v = np.zeros(m + 1)
    p = np.full(m + 1, -1, dtype=np.int64)   # p[j] = row matched to column j
    for i in range(n):
        p[m] = i                             # column m is the virtual column
        j0 = m
        minv = np.full(m, np.inf)
        way = np.zeros(m, dtype=np.int64)
        used = np.zeros(m + 1, dtype=bool)
        while True:                          # Dijkstra over reduced costs
            used[j0] = True
            i0 = p[j0]
            reduced = cost[i0] - u[i0] - v[:m]
            upd = (~used[:m]) & (reduced < minv)
            minv = np.where(upd, reduced, minv)
            way = np.where(upd, j0, way)
            masked = np.where(used[:m], np.inf, minv)
            j1 = int(np.argmin(masked))
            delta = masked[j1]
            used_cols = np.nonzero(used)[0]
            u[p[used_cols]] += delta
            v[used_cols] -= delta
            minv = np.where(used[:m], minv, minv - delta)
            j0 = j1
            if p[j0] == -1:
                break
        while True:                          # augment along the alternating path
            j1 = int(way[j0])
            p[j0] = p[j1]
            j0 = j1
            if j0 == m:
                break
    rows = p[:m]
    cols = np.arange(m)
    keep = rows >= 0
    rows, cols = rows[keep], cols[keep]
    if transposed:
        rows, cols = cols, rows
    order = np.argsort(rows, kind="stable")
    return rows[order].astype(np.int64), cols[order].astype(np.int64)


def _brute_force_min_cost(C):
    C = np.asarray(C, dtype=np.float64)
    N, M = C.shape
    best = np.inf
    for rows in itertools.permutations(range(N), M):
        best = min(best, sum(C[r, c] for c, r in enumerate(rows)))
    return best


# ----------------------------------------------------------------------------
# Pure-JAX f32 reference for the cost matrix (mirrors the PyTorch module).
# ----------------------------------------------------------------------------
def _reference_cost(logits, pm_flat, tm_flat, labels, w_class, w_mask, w_dice):
    p = jax.nn.sigmoid(pm_flat.astype(jnp.float32))
    t = tm_flat.astype(jnp.float32)
    P = p.shape[-1]
    cost_class = -logits[:, labels]
    cost_mask = (-(p @ t.T) - ((1.0 - p) @ (1.0 - t).T)) / P
    num = 2.0 * (p @ t.T)
    den = p.sum(-1)[:, None] + t.sum(-1)[None, :]
    cost_dice = 1.0 - (num + 1.0) / (den + 1.0)
    return w_class * cost_class + w_mask * cost_mask + w_dice * cost_dice


# ----------------------------------------------------------------------------
# HungarianAssigner forward.
# ----------------------------------------------------------------------------
def hungarian_assigner_forward(outputs, targets,
                               match_cost_class=1.0,
                               match_cost_mask=1.0,
                               match_cost_dice=1.0,
                               _debug_return_costs=False):
    pred_logits = outputs['pred_logits']   # (B, N, C)
    pred_masks = outputs['pred_masks']     # (B, N, H, W)
    B = len(targets)
    num_classes = pred_logits.shape[-1]
    N = pred_masks.shape[1]
    H, W = pred_masks.shape[-2:]
    P = H * W

    indices = [(np.array([], dtype=np.int64), np.array([], dtype=np.int64))
               for _ in range(B)]

    active = []
    for b in range(B):
        if targets[b]['labels'].shape[0] == 0:
            continue
        gt_masks = targets[b]['masks']
        # TODO(synk): bilinear F.interpolate path when pred/gt spatial sizes differ.
        assert gt_masks.shape[-2:] == (H, W), "mask-resize path not implemented"
        active.append(b)

    if not active:
        return (indices, {}) if _debug_return_costs else indices

    m_list = [int(targets[b]['labels'].shape[0]) for b in active]
    M_pad = _round_up(max(m_list) + 1, 128)   # reserve last column for all-ones row

    gt_stack, onehot_stack, tsum_stack = [], [], []
    for b, M in zip(active, m_list):
        gm = jnp.asarray(targets[b]['masks']).reshape(M, P).astype(jnp.float32)
        lb = jnp.asarray(targets[b]['labels'])
        # gt masks: real rows, zero padding, final all-ones row (psum via MXU).
        gm_p = jnp.concatenate(
            [gm.astype(jnp.bfloat16),
             jnp.zeros((M_pad - M - 1, P), jnp.bfloat16),
             jnp.ones((1, P), jnp.bfloat16)], axis=0)            # (M_pad, P)
        gt_stack.append(gm_p)
        oh = jax.nn.one_hot(lb, num_classes, dtype=jnp.float32).T  # (C, M)
        onehot_stack.append(jnp.pad(oh, ((0, 0), (0, M_pad - M))))
        ts = gm.sum(axis=-1)[None, :]                              # (1, M)
        tsum_stack.append(jnp.pad(ts, ((0, 0), (0, M_pad - M))))

    act_idx = jnp.asarray(active, dtype=jnp.int32)
    logits_b = jnp.asarray(pred_logits)[act_idx].astype(jnp.float32)          # (Ba,N,C)
    pmask_b = jnp.asarray(pred_masks)[act_idx].reshape(len(active), N, P)
    pmask_b = pmask_b.astype(jnp.float32)                                     # (Ba,N,P)

    cost = _compute_cost_matrices(
        logits_b, pmask_b, jnp.stack(gt_stack), jnp.stack(onehot_stack),
        jnp.stack(tsum_stack),
        num_pixels=P, w_class=float(match_cost_class),
        w_mask=float(match_cost_mask), w_dice=float(match_cost_dice))

    cost_np = np.asarray(jax.block_until_ready(cost))   # single host sync
    costs = {}
    for idx, b in enumerate(active):
        M = m_list[idx]
        C = cost_np[idx, :N, :M]
        costs[b] = C
        indices[b] = _linear_sum_assignment(C)

    return (indices, costs) if _debug_return_costs else indices


# ----------------------------------------------------------------------------
# Example run.
# ----------------------------------------------------------------------------
if __name__ == "__main__":
    key = jax.random.PRNGKey(0)
    B, N, Ccls, H, W = 3, 8, 4, 16, 16

    k1, k2, k3 = jax.random.split(key, 3)
    pred_logits = jax.random.normal(k1, (B, N, Ccls), dtype=jnp.float32)
    pred_masks = jax.random.normal(k2, (B, N, H, W), dtype=jnp.float32)

    # three images: 3 GT instances, 2 GT instances, 0 GT instances (empty path)
    n_gt = [3, 2, 0]
    targets = []
    for b in range(B):
        km, kl = jax.random.split(jax.random.fold_in(k3, b))
        gt_masks = (jax.random.uniform(km, (n_gt[b], H, W)) > 0.5).astype(jnp.float32)
        gt_labels = jax.random.randint(kl, (n_gt[b],), 0, Ccls)
        targets.append({'masks': gt_masks, 'labels': gt_labels})

    outputs = {'pred_logits': pred_logits, 'pred_masks': pred_masks}
    indices, costs = hungarian_assigner_forward(
        outputs, targets, match_cost_class=1.0, match_cost_mask=1.0,
        match_cost_dice=1.0, _debug_return_costs=True)

    # sanity: one matched (unique) pred per GT instance; empty image stays empty
    for b, (pred_ids, gt_ids) in enumerate(indices):
        assert pred_ids.shape[0] == n_gt[b] and gt_ids.shape[0] == n_gt[b]
        assert len(set(pred_ids.tolist())) == n_gt[b]
        assert sorted(gt_ids.tolist()) == list(range(n_gt[b]))

    # correctness: Pallas cost vs pure-JAX f32 reference; Hungarian vs brute force
    for b in range(B):
        if n_gt[b] == 0:
            continue
        M = n_gt[b]
        pm = pred_masks[b].reshape(N, -1)
        tm = targets[b]['masks'].reshape(M, -1)
        C_ref = np.asarray(_reference_cost(pred_logits[b], pm, tm,
                                           targets[b]['labels'], 1.0, 1.0, 1.0))
        C = costs[b]
        np.testing.assert_allclose(C, C_ref, rtol=3e-2, atol=3e-2)
        rows, cols = indices[b]
        assert abs(C[rows, cols].sum() - _brute_force_min_cost(C)) < 1e-6

    print("KERNEL_OK")
</pallas_src>

<mosaic_0001>
module attributes {stable_mosaic.version = 11 : i64} {
  func.func @_cost_kernel(%arg0: i32, %arg1: i32, %arg2: i32, %arg3: memref<1x16x4xf32, #tpu.memory_space<vmem>>, %arg4: memref<1x4x128xf32, #tpu.memory_space<vmem>>, %arg5: memref<1x1x128xf32, #tpu.memory_space<vmem>>, %arg6: memref<1x16x256xf32, #tpu.memory_space<vmem>>, %arg7: memref<1x128x256xbf16, #tpu.memory_space<vmem>>, %arg8: memref<1x16x128xf32, #tpu.memory_space<vmem>>, %arg9: memref<16x128xf32, #tpu.memory_space<vmem>>) attributes {dimension_semantics = [#tpu.dimension_semantics<parallel>, #tpu.dimension_semantics<parallel>, #tpu.dimension_semantics<arbitrary>], iteration_bounds = array<i64: 2, 1, 1>, scalar_prefetch = 0 : i64, scratch_operands = 1 : i64, tpu.core_type = #tpu.core_type<tc>, window_params = [{transform_indices = @transform_0, window_bounds = array<i64: 1, 16, 4>}, {transform_indices = @transform_1, window_bounds = array<i64: 1, 4, 128>}, {transform_indices = @transform_2, window_bounds = array<i64: 1, 1, 128>}, {transform_indices = @transform_3, window_bounds = array<i64: 1, 16, 256>}, {transform_indices = @transform_4, window_bounds = array<i64: 1, 128, 256>}, {transform_indices = @transform_5, window_bounds = array<i64: 1, 16, 128>}]} {
    %c0_i32 = arith.constant 0 : i32
    %0 = arith.cmpi eq, %arg2, %c0_i32 : i32
    %1 = arith.extui %0 : i1 to i32
    %c0_i32_0 = arith.constant 0 : i32
    %2 = arith.cmpi ne, %1, %c0_i32_0 : i32
    scf.if %2 {
      %cst_13 = arith.constant 0.000000e+00 : f32
      %20 = vector.broadcast %cst_13 : f32 to vector<16x128xf32>
      %c0_14 = arith.constant 0 : index
      %c0_15 = arith.constant 0 : index
      %21 = vector.load %arg9[%c0_14, %c0_15] : memref<16x128xf32, #tpu.memory_space<vmem>>, vector<16x128xf32>
      tpu.vector_store %arg9[%c0_14, %c0_15], %20 {strides = array<i32>} : memref<16x128xf32, #tpu.memory_space<vmem>>, vector<16x128xf32>,
    } else {
    }
    %c0 = arith.constant 0 : index
    %c0_1 = arith.constant 0 : index
    %c0_2 = arith.constant 0 : index
    %3 = vector.load %arg6[%c0, %c0_1, %c0_2] : memref<1x16x256xf32, #tpu.memory_space<vmem>>, vector<1x16x256xf32>
    %4 = vector.shape_cast %3 : vector<1x16x256xf32> to vector<16x256xf32>
    %5 = arith.negf %4 : vector<16x256xf32>
    %6 = math.exp %5 : vector<16x256xf32>
    %cst = arith.constant 1.000000e+00 : f32
    %7 = vector.broadcast %cst : f32 to vector<16x256xf32>
    %8 = arith.addf %7, %6 : vector<16x256xf32>
    %9 = arith.divf %7, %8 : vector<16x256xf32>
    %c0_3 = arith.constant 0 : index
    %c0_4 = arith.constant 0 : index
    %10 = vector.load %arg9[%c0_3, %c0_4] : memref<16x128xf32, #tpu.memory_space<vmem>>, vector<16x128xf32>
    %11 = arith.truncf %9 : vector<16x256xf32> to vector<16x256xbf16>
    %c0_5 = arith.constant 0 : index
    %c0_6 = arith.constant 0 : index
    %c0_7 = arith.constant 0 : index
    %12 = vector.load %arg7[%c0_5, %c0_6, %c0_7] : memref<1x128x256xbf16, #tpu.memory_space<vmem>>, vector<1x128x256xbf16>
    %13 = vector.shape_cast %12 : vector<1x128x256xbf16> to vector<128x256xbf16>
    %cst_8 = arith.constant dense<0.000000e+00> : vector<16x128xf32>
    %14 = tpu.matmul %11, %13, %cst_8 {dimension_numbers = #tpu.dot_dimension_numbers<[1], [1], [0], [0], [0, 0, 1, 0], [], []>} : vector<16x256xbf16>, vector<128x256xbf16>, vector<16x128xf32> -> vector<16x128xf32>
    %15 = arith.addf %10, %14 : vector<16x128xf32>
    %c0_9 = arith.constant 0 : index
    %c0_10 = arith.constant 0 : index
    %16 = vector.load %arg9[%c0_9, %c0_10] : memref<16x128xf32, #tpu.memory_space<vmem>>, vector<16x128xf32>
    tpu.vector_store %arg9[%c0_9, %c0_10], %15 {strides = array<i32>} : memref<16x128xf32, #tpu.memory_space<vmem>>, vector<16x128xf32>,
    %c0_i32_11 = arith.constant 0 : i32
    %17 = arith.cmpi eq, %arg2, %c0_i32_11 : i32
    %18 = arith.extui %17 : i1 to i32
    %c0_i32_12 = arith.constant 0 : i32
    %19 = arith.cmpi ne, %18, %c0_i32_12 : i32
    scf.if %19 {
      %c0_13 = arith.constant 0 : index
      %c0_14 = arith.constant 0 : index
      %20 = vector.load %arg9[%c0_13, %c0_14] : memref<16x128xf32, #tpu.memory_space<vmem>>, vector<16x128xf32>
      %21 = vector.extract_strided_slice %20 {offsets = [0, 127], sizes = [16, 1], strides = [1, 1]} : vector<16x128xf32> to vector<16x1xf32>
      %c0_15 = arith.constant 0 : index
      %c0_16 = arith.constant 0 : index
      %c0_17 = arith.constant 0 : index
      %22 = vector.load %arg5[%c0_15, %c0_16, %c0_17] : memref<1x1x128xf32, #tpu.memory_space<vmem>>, vector<1x1x128xf32>
      %23 = vector.shape_cast %22 : vector<1x1x128xf32> to vector<1x128xf32>
      %24 = vector.broadcast %21 : vector<16x1xf32> to vector<16x128xf32>
      %25 = vector.broadcast %23 : vector<1x128xf32> to vector<16x128xf32>
      %26 = arith.addf %24, %25 : vector<16x128xf32>
      %cst_18 = arith.constant 2.000000e+00 : f32
      %27 = vector.broadcast %cst_18 : f32 to vector<16x128xf32>
      %28 = arith.mulf %27, %20 : vector<16x128xf32>
      %cst_19 = arith.constant 2.560000e+02 : f32
      %29 = vector.broadcast %cst_19 : f32 to vector<16x128xf32>
      %30 = arith.addf %28, %29 : vector<16x128xf32>
      %31 = arith.subf %30, %26 : vector<16x128xf32>
      %cst_20 = arith.constant 0.000000e+00 : f32
      %32 = vector.broadcast %cst_20 : f32 to vector<16x128xf32>
      %33 = arith.subf %32, %31 : vector<16x128xf32>
      %cst_21 = arith.constant 3.906250e-03 : f32
      %34 = vector.broadcast %cst_21 : f32 to vector<16x128xf32>
      %35 = arith.mulf %33, %34 : vector<16x128xf32>
      %cst_22 = arith.constant 2.000000e+00 : f32
      %36 = vector.broadcast %cst_22 : f32 to vector<16x128xf32>
      %37 = arith.mulf %36, %20 : vector<16x128xf32>
      %cst_23 = arith.constant 1.000000e+00 : f32
      %38 = vector.broadcast %cst_23 : f32 to vector<16x128xf32>
      %39 = arith.addf %37, %38 : vector<16x128xf32>
      %cst_24 = arith.constant 1.000000e+00 : f32
      %40 = vector.broadcast %cst_24 : f32 to vector<16x128xf32>
      %41 = arith.addf %26, %40 : vector<16x128xf32>
      %42 = tpu.reciprocal %41 {approx = true} : vector<16x128xf32> -> vector<16x128xf32>
      %43 = arith.mulf %39, %42 : vector<16x128xf32>
      %cst_25 = arith.constant 1.000000e+00 : f32
      %44 = vector.broadcast %cst_25 : f32 to vector<16x128xf32>
      %45 = arith.subf %44, %43 : vector<16x128xf32>
      %c0_26 = arith.constant 0 : index
      %c0_27 = arith.constant 0 : index
      %c0_28 = arith.constant 0 : index
      %46 = vector.load %arg3[%c0_26, %c0_27, %c0_28] : memref<1x16x4xf32, #tpu.memory_space<vmem>>, vector<1x16x4xf32>
      %47 = vector.shape_cast %46 : vector<1x16x4xf32> to vector<16x4xf32>
      %c0_29 = arith.constant 0 : index
      %c0_30 = arith.constant 0 : index
      %c0_31 = arith.constant 0 : index
      %48 = vector.load %arg4[%c0_29, %c0_30, %c0_31] : memref<1x4x128xf32, #tpu.memory_space<vmem>>, vector<1x4x128xf32>
      %49 = vector.shape_cast %48 : vector<1x4x128xf32> to vector<4x128xf32>
      %cst_32 = arith.constant dense<0.000000e+00> : vector<16x128xf32>
      %50 = tpu.matmul %47, %49, %cst_32 {dimension_numbers = #tpu.dot_dimension_numbers<[1], [0], [0], [1], [0, 0, 1, 1], [], []>} : vector<16x4xf32>, vector<4x128xf32>, vector<16x128xf32> -> vector<16x128xf32>
      %cst_33 = arith.constant 0.000000e+00 : f32
      %51 = vector.broadcast %cst_33 : f32 to vector<16x128xf32>
      %52 = arith.subf %51, %50 : vector<16x128xf32>
      %cst_34 = arith.constant 1.000000e+00 : f32
      %53 = vector.broadcast %cst_34 : f32 to vector<16x128xf32>
      %54 = arith.mulf %53, %52 : vector<16x128xf32>
      %cst_35 = arith.constant 1.000000e+00 : f32
      %55 = vector.broadcast %cst_35 : f32 to vector<16x128xf32>
      %56 = arith.mulf %55, %35 : vector<16x128xf32>
      %57 = arith.addf %54, %56 : vector<16x128xf32>
      %cst_36 = arith.constant 1.000000e+00 : f32
      %58 = vector.broadcast %cst_36 : f32 to vector<16x128xf32>
      %59 = arith.mulf %58, %45 : vector<16x128xf32>
      %60 = arith.addf %57, %59 : vector<16x128xf32>
      %c0_37 = arith.constant 0 : index
      %c0_38 = arith.constant 0 : index
      %c0_39 = arith.constant 0 : index
      %61 = vector.load %arg8[%c0_37, %c0_38, %c0_39] : memref<1x16x128xf32, #tpu.memory_space<vmem>>, vector<1x16x128xf32>
      %62 = vector.shape_cast %61 : vector<1x16x128xf32> to vector<16x128xf32>
      %63 = vector.shape_cast %60 : vector<16x128xf32> to vector<1x16x128xf32>
      tpu.vector_store %arg8[%c0_37, %c0_38, %c0_39], %63 {strides = array<i32>} : memref<1x16x128xf32, #tpu.memory_space<vmem>>, vector<1x16x128xf32>,
    } else {
    }
    return
  }
  func.func @transform_0(%arg0: i32, %arg1: i32, %arg2: i32) -> (i32, i32, i32) {
    %c0_i32 = arith.constant 0 : i32
    %c0_i32_0 = arith.constant 0 : i32
    return %arg0, %arg1, %c0_i32 : i32, i32, i32
  }
  func.func @transform_1(%arg0: i32, %arg1: i32, %arg2: i32) -> (i32, i32, i32) {
    %c0_i32 = arith.constant 0 : i32
    %c0_i32_0 = arith.constant 0 : i32
    %c0_i32_1 = arith.constant 0 : i32
    return %arg0, %c0_i32, %c0_i32_0 : i32, i32, i32
  }
  func.func @transform_2(%arg0: i32, %arg1: i32, %arg2: i32) -> (i32, i32, i32) {
    %c0_i32 = arith.constant 0 : i32
    %c0_i32_0 = arith.constant 0 : i32
    %c0_i32_1 = arith.constant 0 : i32
    return %arg0, %c0_i32, %c0_i32_0 : i32, i32, i32
  }
  func.func @transform_3(%arg0: i32, %arg1: i32, %arg2: i32) -> (i32, i32, i32) {
    %c0_i32 = arith.constant 0 : i32
    return %arg0, %arg1, %arg2 : i32, i32, i32
  }
  func.func @transform_4(%arg0: i32, %arg1: i32, %arg2: i32) -> (i32, i32, i32) {
    %c0_i32 = arith.constant 0 : i32
    %c0_i32_0 = arith.constant 0 : i32
    return %arg0, %c0_i32, %arg2 : i32, i32, i32
  }
  func.func @transform_5(%arg0: i32, %arg1: i32, %arg2: i32) -> (i32, i32, i32) {
    %c0_i32 = arith.constant 0 : i32
    %c0_i32_0 = arith.constant 0 : i32
    return %arg0, %arg1, %c0_i32 : i32, i32, i32
  }
}

</mosaic_0001>

<llo_original>
// kernel: _compute_cost_matrices.1
$region0: #{_compute_cost_matrices.1}
  #allocation0 [shape = 'u32[]', space=smem, size = 0x4, offset = 0x4, fixed_abs, tag = 'smem constant byte address 0x4 - core index']
  #allocation1 [shape = 'u32[144,128]{1,0:T(1,128)}', space=vmem, size = 0x12000, scoped, tag = 'internal scratch']
  #allocation2 [shape = 'f32[16,128]{1,0:T(8,128)}', space=vmem, size = 0x2000, scoped, tag = 'scratch operand']
  %s0 = inlined_call_operand.vmem [shape: f32[2,16,4], index: 0, kind: input, shape index: {}]
  %s1 = inlined_call_operand.vmem [shape: f32[2,4,128], index: 1, kind: input, shape index: {}]
  %s2 = inlined_call_operand.vmem [shape: f32[2,1,128], index: 2, kind: input, shape index: {}]
  %s3 = inlined_call_operand.vmem [shape: f32[2,16,256], index: 3, kind: input, shape index: {}]
  %s4 = inlined_call_operand.hbm [shape: bf16[2,128,256], index: 4, kind: input, shape index: {}]
  %s5 = inlined_call_operand.hbm [shape: f32[2,16,128], index: 5, kind: output, shape index: {}]
  %s6 = sld [smem:[#allocation0]]
  $region65: #{_compute_cost_matrices.1} parent=0
    _
  %s8 = ssub.s32 1, %s6
  %s9 = scalar_select 0, %s8, %s6
  $region1: #{_compute_cost_matrices.1} parent=0
    #allocation3 [shape = 'u8[131072]{0}', space=vmem, size = 0x20000, scoped, tag = 'input window, operand 4']
    #allocation4 [shape = 's32[2]{0}', space=sflag, size = 0x8, scoped, tag = 'scoped memory for _compute_cost_matrices.1']
    #allocation5 [shape = 's32[2]{0}', space=sflag, size = 0x8, scoped, tag = 'scoped memory for _compute_cost_matrices.1']
    #allocation6 [shape = 'u8[16384]{0}', space=vmem, size = 0x4000, scoped, tag = 'output window, operand 0']
    %10 = vsyncpa [#allocation4], 0
    %s11 = scalar_lea.sflag [#allocation4], 1
    %12 = vsyncpa %s11, 0
    %13 = vsyncpa [#allocation5], 0
    %s14 = scalar_lea.sflag [#allocation5], 1
    %15 = vsyncpa %s14, 0
    loop: start=0, step=1, limit=4
    $region2: #{_compute_cost_matrices.1} parent=1 // loop_pre_header
      _
    $region3: #{_compute_cost_matrices.1} parent=1 // loop_header
      %s17 = sphi 0, %s21
      %p18 = scmp.ge.s32.totalorder %s17, 4
      %s24 = sphi 0, %s43
      %s25 = sphi 0, %s39
      %s26 = sphi 0, %s35
      %s27 = sphi 0, %s24
      %s28 = sphi 0, %s25
      %s29 = sphi 0, %s26
      %s30 = sphi 0, %s27
      %s31 = sphi 0, %s28
      %s32 = sphi 0, %s29
      %s48 = sphi 0, %s50
      %s51 = sphi 0, %s48
      %s52 = sphi 0, %s51
      %s68 = sphi 0, %s52
      %s74 = sphi 0, %s76
      %s77 = sphi 0, %s74
      %s78 = sphi 0, %s77
      %s94 = sphi 0, %s78
      %s100 = sphi 0, %s102
      %s103 = sphi 0, %s100
      %s104 = sphi 0, %s103
      %s120 = sphi 0, %s104
      %s130 = sphi 0, %s132
      %s133 = sphi 0, %s130
      %s134 = sphi 0, %s133
      %s150 = sphi 0, %s134
      %s158 = sphi 0, %s160
      %s161 = sphi 0, %s158
      %s162 = sphi 0, %s161
      %s178 = sphi 0, %s162
      %s186 = sphi 0, %s188
      %s189 = sphi 0, %s186
      %s190 = sphi 0, %s189
      %s206 = sphi 0, %s190
    $region4: #{_compute_cost_matrices.1} parent=1 // loop_header_branch
      %20 = sbr.rel (%p18) target = $region8
    $region5: #{_compute_cost_matrices.1} parent=1 // loop_body
      %s22 = ssub.s32 %s17, 1
      %s23 = ssub.s32 %s17, 2
      %s33 = sadd.s32 1, %s26
      %p34 = scmp.ge.s32.totalorder %s33, 1
      %s35 = scalar_select %p34, 0, %s33
      %s36 = sadd.s32 1, %s25
      %s37 = scalar_select %p34, %s36, %s25
      %p38 = scmp.ge.s32.totalorder %s37, 1
      %s39 = scalar_select %p38, 0, %s37
      %s40 = sadd.s32 1, %s24
      %s41 = scalar_select %p38, %s40, %s24
      %p42 = scmp.ge.s32.totalorder %s41, 2
      %s43 = scalar_select %p42, 0, %s41
      %s44 = ssub.s32 %s24, %s43
      %s45 = ssub.s32 %s25, %s39
      %s46 = sor.u32 %s44, %s45
      %p47 = scmp.eq.s32.totalorder %s46, 0
      %s49 = sadd.s32 %s48, 1
      %s50 = scalar_select %p47, %s48, %s49
      %p53 = pneg %p47
      %p54 = scmp.eq.s32.totalorder %s17, 1
      %p55 = por %p53, %p54
      %p56 = scmp.ne.s32.totalorder %s48, %s51
      %p57 = scmp.eq.s32.totalorder %s17, 0
      %p58 = por %p56, %p57
      %p59 = scmp.ne.s32.totalorder %s48, %s51
      %p60 = scmp.eq.s32.totalorder %s22, 1
      %p61 = por %p59, %p60
      %p62 = scmp.ne.s32.totalorder %s51, %s52
      %p63 = scmp.eq.s32.totalorder %s22, 0
      %p64 = por %p62, %p63
      %p65 = scmp.ne.s32.totalorder %s51, %s52
      %p66 = scmp.eq.s32.totalorder %s23, 1
      %p67 = por %p65, %p66
      %p69 = scmp.ne.s32.totalorder %s52, %s68
      %p70 = scmp.eq.s32.totalorder %s23, 0
      %p71 = por %p69, %p70
      %s72 = ssub.s32 %s24, %s43
      %p73 = scmp.eq.s32.totalorder %s72, 0
      %s75 = sadd.s32 %s74, 1
      %s76 = scalar_select %p73, %s74, %s75
      %p79 = pneg %p73
      %p80 = scmp.eq.s32.totalorder %s17, 1
      %p81 = por %p79, %p80
      %p82 = scmp.ne.s32.totalorder %s74, %s77
      %p83 = scmp.eq.s32.totalorder %s17, 0
      %p84 = por %p82, %p83
      %p85 = scmp.ne.s32.totalorder %s74, %s77
      %p86 = scmp.eq.s32.totalorder %s22, 1
      %p87 = por %p85, %p86
      %p88 = scmp.ne.s32.totalorder %s77, %s78
      %p89 = scmp.eq.s32.totalorder %s22, 0
      %p90 = por %p88, %p89
      %p91 = scmp.ne.s32.totalorder %s77, %s78
      %p92 = scmp.eq.s32.totalorder %s23, 1
      %p93 = por %p91, %p92
      %p95 = scmp.ne.s32.totalorder %s78, %s94
      %p96 = scmp.eq.s32.totalorder %s23, 0
      %p97 = por %p95, %p96
      %s98 = ssub.s32 %s24, %s43
      %p99 = scmp.eq.s32.totalorder %s98, 0
      %s101 = sadd.s32 %s100, 1
      %s102 = scalar_select %p99, %s100, %s101
      %p105 = pneg %p99
      %p106 = scmp.eq.s32.totalorder %s17, 1
      %p107 = por %p105, %p106
      %p108 = scmp.ne.s32.totalorder %s100, %s103
      %p109 = scmp.eq.s32.totalorder %s17, 0
      %p110 = por %p108, %p109
      %p111 = scmp.ne.s32.totalorder %s100, %s103
      %p112 = scmp.eq.s32.totalorder %s22, 1
      %p113 = por %p111, %p112
      %p114 = scmp.ne.s32.totalorder %s103, %s104
      %p115 = scmp.eq.s32.totalorder %s22, 0
      %p116 = por %p114, %p115
      %p117 = scmp.ne.s32.totalorder %s103, %s104
      %p118 = scmp.eq.s32.totalorder %s23, 1
      %p119 = por %p117, %p118
      %p121 = scmp.ne.s32.totalorder %s104, %s120
      %p122 = scmp.eq.s32.totalorder %s23, 0
      %p123 = por %p121, %p122
      %s124 = ssub.s32 %s24, %s43
      %s125 = ssub.s32 %s25, %s39
      %s126 = sor.u32 %s124, %s125
      %s127 = ssub.s32 %s26, %s35
      %s128 = sor.u32 %s126, %s127
      %p129 = scmp.eq.s32.totalorder %s128, 0
      %s131 = sadd.s32 %s130, 1
      %s132 = scalar_select %p129, %s130, %s131
      %p135 = pneg %p129
      %p136 = scmp.eq.s32.totalorder %s17, 1
      %p137 = por %p135, %p136
      %p138 = scmp.ne.s32.totalorder %s130, %s133
      %p139 = scmp.eq.s32.totalorder %s17, 0
      %p140 = por %p138, %p139
      %p141 = scmp.ne.s32.totalorder %s130, %s133
      %p142 = scmp.eq.s32.totalorder %s22, 1
      %p143 = por %p141, %p142
      %p144 = scmp.ne.s32.totalorder %s133, %s134
      %p145 = scmp.eq.s32.totalorder %s22, 0
      %p146 = por %p144, %p145
      %p147 = scmp.ne.s32.totalorder %s133, %s134
      %p148 = scmp.eq.s32.totalorder %s23, 1
      %p149 = por %p147, %p148
      %p151 = scmp.ne.s32.totalorder %s134, %s150
      %p152 = scmp.eq.s32.totalorder %s23, 0
      %p153 = por %p151, %p152
      %s154 = ssub.s32 %s24, %s43
      %s155 = ssub.s32 %s26, %s35
      %s156 = sor.u32 %s154, %s155
      %p157 = scmp.eq.s32.totalorder %s156, 0
      %s159 = sadd.s32 %s158, 1
      %s160 = scalar_select %p157, %s158, %s159
      %p163 = pneg %p157
      %p164 = scmp.eq.s32.totalorder %s17, 1
      %p165 = por %p163, %p164
      %p166 = scmp.ne.s32.totalorder %s158, %s161
      %p167 = scmp.eq.s32.totalorder %s17, 0
      %p168 = por %p166, %p167
      %p169 = scmp.ne.s32.totalorder %s158, %s161
      %p170 = scmp.eq.s32.totalorder %s22, 1
      %p171 = por %p169, %p170
      %p172 = scmp.ne.s32.totalorder %s161, %s162
      %p173 = scmp.eq.s32.totalorder %s22, 0
      %p174 = por %p172, %p173
      %p175 = scmp.ne.s32.totalorder %s161, %s162
      %p176 = scmp.eq.s32.totalorder %s23, 1
      %p177 = por %p175, %p176
      %p179 = scmp.ne.s32.totalorder %s162, %s178
      %p180 = scmp.eq.s32.totalorder %s23, 0
      %p181 = por %p179, %p180
      %s182 = ssub.s32 %s24, %s43
      %s183 = ssub.s32 %s25, %s39
      %s184 = sor.u32 %s182, %s183
      %p185 = scmp.eq.s32.totalorder %s184, 0
      %s187 = sadd.s32 %s186, 1
      %s188 = scalar_select %p185, %s186, %s187
      %p191 = pneg %p185
      %p192 = scmp.eq.s32.totalorder %s17, 1
      %p193 = por %p191, %p192
      %p194 = scmp.ne.s32.totalorder %s186, %s189
      %p195 = scmp.eq.s32.totalorder %s17, 0
      %p196 = por %p194, %p195
      %p197 = scmp.ne.s32.totalorder %s186, %s189
      %p198 = scmp.eq.s32.totalorder %s22, 1
      %p199 = por %p197, %p198
      %p200 = scmp.ne.s32.totalorder %s189, %s190
      %p201 = scmp.eq.s32.totalorder %s22, 0
      %p202 = por %p200, %p201
      %p203 = scmp.ne.s32.totalorder %s189, %s190
      %p204 = scmp.eq.s32.totalorder %s23, 1
      %p205 = por %p203, %p204
      %p207 = scmp.ne.s32.totalorder %s190, %s206
      %p208 = scmp.eq.s32.totalorder %s23, 0
      %p209 = por %p207, %p208
      %p210 = scmp.le.s32.totalorder 1, %s17
      %p211 = scmp.lt.s32.totalorder %s17, 3
      %p212 = pnand %p210, %p211
      %p213 = pneg %p212
      // Predicated region
      $region9: #{_compute_cost_matrices.1} parent=5 // pred_check
        _
      $region10: #{_compute_cost_matrices.1} parent=5 // pred_check_branch
        %215 = sbr.rel (%p212) target = $region12
      $region11: #{_compute_cost_matrices.1} parent=5 // pred_region
        %s216 = ssub.s32 %s17, 1
      $region12: #{_compute_cost_matrices.1} parent=5 // pred_fallthru
        _
      %p217 = scmp.lt.s32.totalorder %s17, 2
      // Predicated region
      $region13: #{_compute_cost_matrices.1} parent=5 // pred_check
        %p218 = pneg %p217
      $region14: #{_compute_cost_matrices.1} parent=5 // pred_check_branch
        %220 = sbr.rel (%p218) target = $region16
      $region15: #{_compute_cost_matrices.1} parent=5 // pred_region
        // Predicated region
        $region17: #{_compute_cost_matrices.1} parent=15 // pred_check
          %p221 = pneg %p58
        $region18: #{_compute_cost_matrices.1} parent=15 // pred_check_branch
          %223 = sbr.rel (%p221) target = $region20
        $region19: #{_compute_cost_matrices.1} parent=15 // pred_region
          %s224 = smul.u32 2, %s25
          %p225 = scmp.lt.s32.totalorder %s24, 1
          %s226 = scalar_select %p225, %s24, 1
          %p227 = scmp.lt.s32.totalorder %s224, 1
          %s228 = scalar_select %p227, %s224, 1
          %s229 = smul.addr %s226, 2
          %s230 = sadd.s32 %s228, %s229
          %s231 = smul.addr %s230, 8
          %s232 = scalar_lea.vmem %s0, %s231
          %s233 = smul.u32 2, %s25
        $region20: #{_compute_cost_matrices.1} parent=15 // pred_fallthru
          _
        // Predicated region
        $region21: #{_compute_cost_matrices.1} parent=15 // pred_check
          %p234 = pneg %p84
        $region22: #{_compute_cost_matrices.1} parent=15 // pred_check_branch
          %236 = sbr.rel (%p234) target = $region24
        $region23: #{_compute_cost_matrices.1} parent=15 // pred_region
          %p237 = scmp.lt.s32.totalorder %s24, 1
          %s238 = scalar_select %p237, %s24, 1
          %s239 = smul.addr %s238, 4
          %s240 = scalar_lea.vmem %s1, %s239
        $region24: #{_compute_cost_matrices.1} parent=15 // pred_fallthru
          _
        // Predicated region
        $region25: #{_compute_cost_matrices.1} parent=15 // pred_check
          %p241 = pneg %p110
        $region26: #{_compute_cost_matrices.1} parent=15 // pred_check_branch
          %243 = sbr.rel (%p241) target = $region28
        $region27: #{_compute_cost_matrices.1} parent=15 // pred_region
          %p244 = scmp.lt.s32.totalorder %s24, 1
          %s245 = scalar_select %p244, %s24, 1
          %s246 = scalar_lea.vmem %s2, %s245
        $region28: #{_compute_cost_matrices.1} parent=15 // pred_fallthru
          _
        // Predicated region
        $region29: #{_compute_cost_matrices.1} parent=15 // pred_check
          %p247 = pneg %p140
        $region30: #{_compute_cost_matrices.1} parent=15 // pred_check_branch
          %249 = sbr.rel (%p247) target = $region32
        $region31: #{_compute_cost_matrices.1} parent=15 // pred_region
          %s250 = smul.u32 2, %s25
          %s251 = smul.u32 2, %s26
          %p252 = scmp.lt.s32.totalorder %s24, 1
          %s253 = scalar_select %p252, %s24, 1
          %p254 = scmp.lt.s32.totalorder %s250, 1
          %s255 = scalar_select %p254, %s250, 1
          %p256 = scmp.lt.s32.totalorder %s251, 1
          %s257 = scalar_select %p256, %s251, 1
          %s258 = smul.addr %s255, 2
          %s259 = sadd.s32 %s257, %s258
          %s260 = smul.addr %s253, 4
          %s261 = sadd.s32 %s259, %s260
          %s262 = smul.addr %s261, 8
          %s263 = scalar_lea.vmem %s3, %s262
          %s264 = smul.u32 2, %s25
          %s265 = smul.u32 2, %s26
        $region32: #{_compute_cost_matrices.1} parent=15 // pred_fallthru
          _
        // Predicated region
        $region33: #{_compute_cost_matrices.1} parent=15 // pred_check
          %p266 = pneg %p168
        $region34: #{_compute_cost_matrices.1} parent=15 // pred_check_branch
          %268 = sbr.rel (%p266) target = $region36
        $region35: #{_compute_cost_matrices.1} parent=15 // pred_region
          %s269 = sand.u32 %s158, 1
          %s270 = scalar_lea.sflag [#allocation4], %s269
          %s271 = sand.u32 %s158, 1
          %s272 = smul.addr %s271, 128
          %s273 = scalar_lea.vmem [#allocation3], %s272
          %s274 = smul.u32 2, %s26
          %s276 = ssub.s32 2048, 2048
          %277 = vsyncadd %s270, %s276
          %s278 = smul.addr %s24, 32
          %s279 = sadd.s32 %s274, %s278
          %s280 = smul.addr %s279, 64
          %s281 = scalar_lea.hbm %s4, %s280
          %s282 = sshll.u32 %s273, 4
          %s283 = int_to_ptr.vmem [resolvable:$true] %s282
          %288 = dma.hbm_to_vmem [thread:$0]  %s281, 2048, %s283, %s270, 128, 128, 8
        $region36: #{_compute_cost_matrices.1} parent=15 // pred_fallthru
          _
      $region16: #{_compute_cost_matrices.1} parent=5 // pred_fallthru
        _
      %p289 = scmp.le.s32.totalorder 1, %s17
      %p290 = scmp.lt.s32.totalorder %s17, 3
      %p291 = pnand %p289, %p290
      %p292 = pneg %p291
      // Predicated region
      $region37: #{_compute_cost_matrices.1} parent=5 // pred_check
        _
      $region38: #{_compute_cost_matrices.1} parent=5 // pred_check_branch
        %294 = sbr.rel (%p291) target = $region40
      $region39: #{_compute_cost_matrices.1} parent=5 // pred_region
        %s295 = ssub.s32 %s17, 1
        %s296 = sand.u32 %s161, 1
        %s297 = scalar_lea.sflag [#allocation4], %s296
        %s298 = sand.u32 %s161, 1
        %s299 = smul.addr %s298, 128
        %s300 = scalar_lea.vmem [#allocation3], %s299
        // Predicated region
        $region41: #{_compute_cost_matrices.1} parent=39 // pred_check
          %p301 = pneg %p174
        $region42: #{_compute_cost_matrices.1} parent=39 // pred_check_branch
          %303 = sbr.rel (%p301) target = $region44
        $region43: #{_compute_cost_matrices.1} parent=39 // pred_region
          %304 = dma.done %s297, 2048
        $region44: #{_compute_cost_matrices.1} parent=39 // pred_fallthru
          _
        %s305 = smul.u32 2, %s28
        %p306 = scmp.lt.s32.totalorder %s27, 1
        %s307 = scalar_select %p306, %s27, 1
        %p308 = scmp.lt.s32.totalorder %s305, 1
        %s309 = scalar_select %p308, %s305, 1
        %s310 = smul.addr %s307, 2
        %s311 = sadd.s32 %s309, %s310
        %s312 = smul.addr %s311, 8
        %s313 = scalar_lea.vmem %s0, %s312
        %p314 = pneg %p64
        %p315 = pneg %p61
        %p316 = scmp.lt.s32.totalorder %s27, 1
        %s317 = scalar_select %p316, %s27, 1
        %s318 = smul.addr %s317, 4
        %s319 = scalar_lea.vmem %s1, %s318
        %p320 = pneg %p90
        %p321 = pneg %p87
        %p322 = scmp.lt.s32.totalorder %s27, 1
        %s323 = scalar_select %p322, %s27, 1
        %s324 = scalar_lea.vmem %s2, %s323
        %p325 = pneg %p116
        %p326 = pneg %p113
        %s327 = smul.u32 2, %s28
        %s328 = smul.u32 2, %s29
        %p329 = scmp.lt.s32.totalorder %s27, 1
        %s330 = scalar_select %p329, %s27, 1
        %p331 = scmp.lt.s32.totalorder %s327, 1
        %s332 = scalar_select %p331, %s327, 1
        %p333 = scmp.lt.s32.totalorder %s328, 1
        %s334 = scalar_select %p333, %s328, 1
        %s335 = smul.addr %s332, 2
        %s336 = sadd.s32 %s334, %s335
        %s337 = smul.addr %s330, 4
        %s338 = sadd.s32 %s336, %s337
        %s339 = smul.addr %s338, 8
        %s340 = scalar_lea.vmem %s3, %s339
        %p341 = pneg %p146
        %p342 = pneg %p143
        %s343 = sand.u32 %s161, 1
        %s344 = scalar_lea.sflag [#allocation4], %s343
        %s345 = sand.u32 %s161, 1
        %s346 = smul.addr %s345, 128
        %s347 = scalar_lea.vmem [#allocation3], %s346
        %p348 = pneg %p174
        %p349 = pneg %p171
        %p350 = pneg %p202
        %p351 = pneg %p199
        %s352 = sand.u32 %s189, 1
        %s353 = scalar_lea.sflag [#allocation5], %s352
        %s354 = sand.u32 %s189, 1
        %s355 = smul.addr %s354, 16
        %s356 = scalar_lea.vmem [#allocation6], %s355
        %s357 = smul.u32 2, %s28
        %p358 = scmp.lt.s32.totalorder %s27, 1
        %s359 = scalar_select %p358, %s27, 1
        %p360 = scmp.lt.s32.totalorder %s357, 1
        %s361 = scalar_select %p360, %s357, 1
        %s362 = smul.addr %s359, 2
        %s363 = sadd.s32 %s361, %s362
        %s364 = smul.addr %s363, 8
        %s365 = scalar_lea.vmem %s0, %s364
        %s366 = smul.u32 2, %s28
        %p367 = scmp.lt.s32.totalorder %s27, 1
        %s368 = scalar_select %p367, %s27, 1
        %s369 = smul.addr %s368, 4
        %s370 = scalar_lea.vmem %s1, %s369
        %p371 = scmp.lt.s32.totalorder %s27, 1
        %s372 = scalar_select %p371, %s27, 1
        %s373 = scalar_lea.vmem %s2, %s372
        %s374 = smul.u32 2, %s28
        %s375 = smul.u32 2, %s29
        %p376 = scmp.lt.s32.totalorder %s27, 1
        %s377 = scalar_select %p376, %s27, 1
        %p378 = scmp.lt.s32.totalorder %s374, 1
        %s379 = scalar_select %p378, %s374, 1
        %p380 = scmp.lt.s32.totalorder %s375, 1
        %s381 = scalar_select %p380, %s375, 1
        %s382 = smul.addr %s379, 2
        %s383 = sadd.s32 %s381, %s382
        %s384 = smul.addr %s377, 4
        %s385 = sadd.s32 %s383, %s384
        %s386 = smul.addr %s385, 8
        %s387 = scalar_lea.vmem %s3, %s386
        %s388 = smul.u32 2, %s28
        %s389 = smul.u32 2, %s29
        %s390 = smul.u32 2, %s29
        %s391 = smul.u32 2, %s28
        %p393 = scmp.eq.s32.totalorder %s29, 0
        // Predicated region
        $region45: #{_compute_cost_matrices.1} parent=39 // pred_check
          %p394 = pneg %p393
        $region46: #{_compute_cost_matrices.1} parent=39 // pred_check_branch
          %396 = sbr.rel (%p394) target = $region48
        $region47: #{_compute_cost_matrices.1} parent=39 // pred_region
          %397 = vst [vmem:[#allocation2] sm:$0xff] 0.0
          %398 = vst [vmem:[#allocation2 + $0x8] sm:$0xff] 0.0
        $region48: #{_compute_cost_matrices.1} parent=39 // pred_fallthru
          _
        %v399 = vld [vmem:[%s387] sm:$0xff]
        %v400 = vld [vmem:[%s387 + $0x8] sm:$0xff]
        %v401 = vld [vmem:[%s387 + $0x10] sm:$0xff]
        %v402 = vld [vmem:[%s387 + $0x18] sm:$0xff]
        %v403 = vxor.u32 %v399, 2147483648
        %v404 = vxor.u32 %v400, 2147483648
        %v405 = vxor.u32 %v401, 2147483648
        %v406 = vxor.u32 %v402, 2147483648
        %v407 = vmul.f32 %v403, 1.442695
        %v408 = vpow.pop %v407
        %v409 = vmul.f32 %v404, 1.442695
        %v410 = vpow.pop %v409
        %v411 = vmul.f32 %v405, 1.442695
        %v412 = vpow.pop %v411
        %v413 = vmul.f32 %v406, 1.442695
        %v414 = vpow.pop %v413
        %v415 = vadd.f32 %v408, 1.0
        %v416 = vadd.f32 %v410, 1.0
        %v417 = vadd.f32 %v412, 1.0
        %v418 = vadd.f32 %v414, 1.0
        %v419 = vrcp.pop %v415
        %v420 = vmul.f32 1.0, %v419
        %v421 = vrcp.pop %v416
        %v422 = vmul.f32 1.0, %v421
        %v423 = vrcp.pop %v417
        %v424 = vmul.f32 1.0, %v423
        %v425 = vrcp.pop %v418
        %v426 = vmul.f32 1.0, %v425
        %v427 = vld [vmem:[#allocation2] sm:$0xff]
        %v428 = vld [vmem:[#allocation2 + $0x8] sm:$0xff]
        %v429 = vpack.c.bf16 %v424, %v420
        %v430 = vpack.c.bf16 %v426, %v422
        %v431 = vld [vmem:[%s300] sm:$0xff]
        %v432 = vld [vmem:[%s300 + $0x8] sm:$0xff]
        %v433 = vld [vmem:[%s300 + $0x10] sm:$0xff]
        %v434 = vld [vmem:[%s300 + $0x18] sm:$0xff]
        %v435 = vld [vmem:[%s300 + $0x20] sm:$0xff]
        %v436 = vld [vmem:[%s300 + $0x28] sm:$0xff]
        %v437 = vld [vmem:[%s300 + $0x30] sm:$0xff]
        %v438 = vld [vmem:[%s300 + $0x38] sm:$0xff]
        %v439 = vld [vmem:[%s300 + $0x40] sm:$0xff]
        %v440 = vld [vmem:[%s300 + $0x48] sm:$0xff]
        %v441 = vld [vmem:[%s300 + $0x50] sm:$0xff]
        %v442 = vld [vmem:[%s300 + $0x58] sm:$0xff]
        %v443 = vld [vmem:[%s300 + $0x60] sm:$0xff]
        %v444 = vld [vmem:[%s300 + $0x68] sm:$0xff]
        %v445 = vld [vmem:[%s300 + $0x70] sm:$0xff]
        %v446 = vld [vmem:[%s300 + $0x78] sm:$0xff]
        %v463 = vunpack.c.l.b16 %v431
        %v464 = vunpack.c.h.b16 %v431
        %v465 = vunpack.c.l.b16 %v432
        %v466 = vunpack.c.h.b16 %v432
        %v467 = vunpack.c.l.b16 %v433
        %v468 = vunpack.c.h.b16 %v433
        %v469 = vunpack.c.l.b16 %v434
        %v470 = vunpack.c.h.b16 %v434
        %v471 = vunpack.c.l.b16 %v435
        %v472 = vunpack.c.h.b16 %v435
        %v473 = vunpack.c.l.b16 %v436
        %v474 = vunpack.c.h.b16 %v436
        %v475 = vunpack.c.l.b16 %v437
        %v476 = vunpack.c.h.b16 %v437
        %v477 = vunpack.c.l.b16 %v438
        %v478 = vunpack.c.h.b16 %v438
        %v479 = vunpack.c.l.b16 %v439
        %v480 = vunpack.c.h.b16 %v439
        %v481 = vunpack.c.l.b16 %v440
        %v482 = vunpack.c.h.b16 %v440
        %v483 = vunpack.c.l.b16 %v441
        %v484 = vunpack.c.h.b16 %v441
        %v485 = vunpack.c.l.b16 %v442
        %v486 = vunpack.c.h.b16 %v442
        %v487 = vunpack.c.l.b16 %v443
        %v488 = vunpack.c.h.b16 %v443
        %v489 = vunpack.c.l.b16 %v444
        %v490 = vunpack.c.h.b16 %v444
        %v491 = vunpack.c.l.b16 %v445
        %v492 = vunpack.c.h.b16 %v445
        %v493 = vunpack.c.l.b16 %v446
        %v494 = vunpack.c.h.b16 %v446
        %v495 = vpack.c.b16 %v465, %v463
        %v496 = vpack.c.b16 %v466, %v464
        %v497 = vpack.c.b16 %v469, %v467
        %v498 = vpack.c.b16 %v470, %v468
        %v499 = vpack.c.b16 %v473, %v471
        %v500 = vpack.c.b16 %v474, %v472
        %v501 = vpack.c.b16 %v477, %v475
        %v502 = vpack.c.b16 %v478, %v476
        %v503 = vpack.c.b16 %v481, %v479
        %v504 = vpack.c.b16 %v482, %v480
        %v505 = vpack.c.b16 %v485, %v483
        %v506 = vpack.c.b16 %v486, %v484
        %v507 = vpack.c.b16 %v489, %v487
        %v508 = vpack.c.b16 %v490, %v488
        %v509 = vpack.c.b16 %v493, %v491
        %v510 = vpack.c.b16 %v494, %v492
        %527 = vmatprep.subr.bf16.mxu0 %v496
        %528 = vmatpush1.bf16.xpose.msra.mxu0 %v495
        %529 = vmatprep.subr.bf16.mxu0 %v498
        %530 = vmatpush1.bf16.xpose.msra.mxu0 %v497
        %531 = vmatprep.subr.bf16.mxu0 %v500
        %532 = vmatpush1.bf16.xpose.msra.mxu0 %v499
        %533 = vmatprep.subr.bf16.mxu0 %v502
        %534 = vmatpush1.bf16.xpose.msra.mxu0 %v501
        %535 = vmatprep.subr.bf16.mxu0 %v504
        %536 = vmatpush1.bf16.xpose.msra.mxu0 %v503
        %537 = vmatprep.subr.bf16.mxu0 %v506
        %538 = vmatpush1.bf16.xpose.msra.mxu0 %v505
        %539 = vmatprep.subr.bf16.mxu0 %v508
        %540 = vmatpush1.bf16.xpose.msra.mxu0 %v507
        %541 = vmatprep.subr.bf16.mxu0 %v510
        %542 = vmatpush1.bf16.xpose.msra.mxu0 %v509
        %543 = vmatprep.subr.bf16.mxu0 0
        %544 = vmatpush1.bf16.xpose.msra.mxu0 0
        %545 = vmatprep.subr.bf16.mxu0 0
        %546 = vmatpush1.bf16.xpose.msra.mxu0 0
        %547 = vmatprep.subr.bf16.mxu0 0
        %548 = vmatpush1.bf16.xpose.msra.mxu0 0
        %549 = vmatprep.subr.bf16.mxu0 0
        %550 = vmatpush1.bf16.xpose.msra.mxu0 0
        %551 = vmatprep.subr.bf16.mxu0 0
        %552 = vmatpush1.bf16.xpose.msra.mxu0 0
        %553 = vmatprep.subr.bf16.mxu0 0
        %554 = vmatpush1.bf16.xpose.msra.mxu0 0
        %555 = vmatprep.subr.bf16.mxu0 0
        %556 = vmatpush1.bf16.xpose.msra.mxu0 0
        %557 = vmatprep.subr.bf16.mxu0 0
        %558 = vmatpush1.bf16.xpose.msra.mxu0 0
        %559 = vmatprep.mubr.bf16.mxu0 %v430
        %560 = vmatmul.mubr.bf16.gmra.mrb[0].mxu0 %v429
        %v561 = vpop.f32.mrb[0].mxu0
        %v562 = vadd.f32 0.0, %v561
        %v563 = vpop.f32.mrb[0].mxu0
        %v564 = vpop.f32.mrb[0].mxu0
        %v565 = vadd.f32 0.0, %v564
        %v566 = vpop.f32.mrb[0].mxu0
        %567 = vdwg.mxu0
        %v568 = vadd.f32 %v427, %v562
        %v569 = vadd.f32 %v428, %v565
        %570 = vst [vmem:[#allocation2] sm:$0xff] %v568
        %571 = vst [vmem:[#allocation2 + $0x8] sm:$0xff] %v569
        // Predicated region
        $region49: #{_compute_cost_matrices.1} parent=39 // pred_check
          %p572 = pneg %p393
        $region50: #{_compute_cost_matrices.1} parent=39 // pred_check_branch
          %574 = sbr.rel (%p572) target = $region52
        $region51: #{_compute_cost_matrices.1} parent=39 // pred_region
          %v575 = vld [vmem:[#allocation2] sm:$0xff]
          %v576 = vld [vmem:[#allocation2 + $0x8] sm:$0xff]
          %v577 = vld [vmem:[%s373] sm:$0x1]
          %579 = vset.pattern.permute.xlu0 127
          %580 = vperm.xlu0 %579, %v575
          %v581 = vpop.permute.xlu0 %580
          %584 = vset.pattern.permute.xlu0 127
          %585 = vperm.xlu0 %584, %v576
          %v586 = vpop.permute.xlu0 %585
          %v589 = vlaneseq
          %v590 = vshrl.u32 %v589, 7
          %v591 = vsub.s32 0, %v590
          %v592 = vrot.slane %v577, %v591
          %v594 = vadd.f32 %v581, %v592
          %v595 = vadd.f32 %v586, %v592
          %v596 = vmul.f32 %v575, 2.0
          %v597 = vmul.f32 %v576, 2.0
          %v598 = vadd.f32 %v596, 256.0
          %v599 = vadd.f32 %v597, 256.0
          %v600 = vsub.f32 %v598, %v594
          %v601 = vsub.f32 %v599, %v595
          %v602 = vsub.f32 0.0, %v600
          %v603 = vsub.f32 0.0, %v601
          %v604 = vmul.f32 %v602, 0.00390625
          %v605 = vmul.f32 %v603, 0.00390625
          %v606 = vadd.f32 %v596, 1.0
          %v607 = vadd.f32 %v597, 1.0
          %v608 = vadd.f32 %v594, 1.0
          %v609 = vadd.f32 %v595, 1.0
          %v610 = vrcp.pop %v608
          %v611 = vrcp.pop %v609
          %v612 = vmul.f32 %v606, %v610
          %v613 = vmul.f32 %v607, %v611
          %v614 = vsub.f32 1.0, %v612
          %v615 = vsub.f32 1.0, %v613
          %v616 = vld [vmem:[%s365] sm:$0xff]
          %v617 = vld [vmem:[%s365 + $0x8] sm:$0xff]
          %v618 = vld [vmem:[%s370] sm:$0xf]
          %vm619 = vcmask 31744
          %v621 = vsel %vm619, %v616, 0
          %v624 = vsel %vm619, %v617, 0
          %vm626 = vcmask 1043456
          %v628 = vsel %vm626, %v618, 0
          %630 = vmatprep.subr.mxu0 0.0
          %631 = vmatpush1.msra.mxu0 %v628
          %632 = vmatprep.subr.mxu0 0.0
          %633 = vmatpush1.msra.mxu0 0.0
          %634 = vmatprep.subr.mxu0 0.0
          %635 = vmatpush1.msra.mxu0 0.0
          %636 = vmatprep.subr.mxu0 0.0
          %637 = vmatpush1.msra.mxu0 0.0
          %638 = vmatprep.subr.mxu0 0.0
          %639 = vmatpush1.msra.mxu0 0.0
          %640 = vmatprep.subr.mxu0 0.0
          %641 = vmatpush1.msra.mxu0 0.0
          %642 = vmatprep.subr.mxu0 0.0
          %643 = vmatpush1.msra.mxu0 0.0
          %644 = vmatprep.subr.mxu0 0.0
          %645 = vmatpush1.msra.mxu0 0.0
          %646 = vmatprep.subr.mxu0 0.0
          %647 = vmatpush1.msra.mxu0 0.0
          %648 = vmatprep.subr.mxu0 0.0
          %649 = vmatpush1.msra.mxu0 0.0
          %650 = vmatprep.subr.mxu0 0.0
          %651 = vmatpush1.msra.mxu0 0.0
          %652 = vmatprep.subr.mxu0 0.0
          %653 = vmatpush1.msra.mxu0 0.0
          %654 = vmatprep.subr.mxu0 0.0
          %655 = vmatpush1.msra.mxu0 0.0
          %656 = vmatprep.subr.mxu0 0.0
          %657 = vmatpush1.msra.mxu0 0.0
          %658 = vmatprep.subr.mxu0 0.0
          %659 = vmatpush1.msra.mxu0 0.0
          %660 = vmatprep.subr.mxu0 0.0
          %661 = vmatpush1.msra.mxu0 0.0
          %662 = vmatprep.subr.mxu0 0.0
          %663 = vmatpush1.msra.mxu0 0.0
          %664 = vmatprep.subr.mxu0 0.0
          %665 = vmatpush1.msra.mxu0 0.0
          %666 = vmatprep.subr.mxu0 0.0
          %667 = vmatpush1.msra.mxu0 0.0
          %668 = vmatprep.subr.mxu0 0.0
          %669 = vmatpush1.msra.mxu0 0.0
          %670 = vmatprep.subr.mxu0 0.0
          %671 = vmatpush1.msra.mxu0 0.0
          %672 = vmatprep.subr.mxu0 0.0
          %673 = vmatpush1.msra.mxu0 0.0
          %674 = vmatprep.subr.mxu0 0.0
          %675 = vmatpush1.msra.mxu0 0.0
          %676 = vmatprep.subr.mxu0 0.0
          %677 = vmatpush1.msra.mxu0 0.0
          %678 = vmatprep.subr.mxu0 0.0
          %679 = vmatpush1.msra.mxu0 0.0
          %680 = vmatprep.subr.mxu0 0.0
          %681 = vmatpush1.msra.mxu0 0.0
          %682 = vmatprep.subr.mxu0 0.0
          %683 = vmatpush1.msra.mxu0 0.0
          %684 = vmatprep.subr.mxu0 0.0
          %685 = vmatpush1.msra.mxu0 0.0
          %686 = vmatprep.subr.mxu0 0.0
          %687 = vmatpush1.msra.mxu0 0.0
          %688 = vmatprep.subr.mxu0 0.0
          %689 = vmatpush1.msra.mxu0 0.0
          %690 = vmatprep.subr.mxu0 0.0
          %691 = vmatpush1.msra.mxu0 0.0
          %692 = vmatprep.subr.mxu0 0.0
          %693 = vmatpush1.msra.mxu0 0.0
          %694 = vmatprep.mubr.f32.mxu0 0.0
          %695 = vmatmul.mubr.f32.gmra.mrb[0].mxu0 %v621
          %v696 = vpop.f32.mrb[0].mxu0
          %v697 = vadd.f32 0.0, %v696
          %v698 = vpop.f32.mrb[0].mxu0
          %699 = vmatprep.mubr.f32.mxu0 0.0
          %700 = vmatmul.mubr.f32.gmra.mrb[0].mxu0 %v624
          %v701 = vpop.f32.mrb[0].mxu0
          %v702 = vadd.f32 0.0, %v701
          %v703 = vpop.f32.mrb[0].mxu0
          %704 = vdwg.mxu0
          %v705 = vsub.f32 0.0, %v697
          %v706 = vsub.f32 0.0, %v702
          %v707 = vadd.f32 %v705, %v604
          %v708 = vadd.f32 %v706, %v605
          %v709 = vadd.f32 %v707, %v614
          %v710 = vadd.f32 %v708, %v615
          %711 = vst [vmem:[%s356] sm:$0xff] %v709
          %712 = vst [vmem:[%s356 + $0x8] sm:$0xff] %v710
        $region52: #{_compute_cost_matrices.1} parent=39 // pred_fallthru
          _
        %s713 = sand.u32 %s189, 1
        %s714 = scalar_lea.sflag [#allocation5], %s713
        %s715 = sand.u32 %s189, 1
        %s716 = smul.addr %s715, 16
        %s717 = scalar_lea.vmem [#allocation6], %s716
        // Predicated region
        $region53: #{_compute_cost_matrices.1} parent=39 // pred_check
          %p718 = pneg %p199
        $region54: #{_compute_cost_matrices.1} parent=39 // pred_check_branch
          %720 = sbr.rel (%p718) target = $region56
        $region55: #{_compute_cost_matrices.1} parent=39 // pred_region
          %s721 = smul.u32 2, %s28
          %s723 = ssub.s32 256, 256
          %724 = vsyncadd %s714, %s723
          %s725 = smul.addr %s27, 2
          %s726 = sadd.s32 %s721, %s725
          %s727 = smul.addr %s726, 128
          %s728 = scalar_lea.hbm %s5, %s727
          %s729 = sshll.u32 %s717, 4
          %s730 = int_to_ptr.vmem [resolvable:$true] %s729
          %735 = dma.vmem_to_hbm [thread:$0]  %s730, 256, %s728, %s714, 128, 128, 8
        $region56: #{_compute_cost_matrices.1} parent=39 // pred_fallthru
          _
      $region40: #{_compute_cost_matrices.1} parent=5 // pred_fallthru
        _
      %p736 = scmp.le.s32.totalorder 2, %s17
      // Predicated region
      $region57: #{_compute_cost_matrices.1} parent=5 // pred_check
        %p737 = pneg %p736
      $region58: #{_compute_cost_matrices.1} parent=5 // pred_check_branch
        %739 = sbr.rel (%p737) target = $region60
      $region59: #{_compute_cost_matrices.1} parent=5 // pred_region
        %s740 = ssub.s32 %s17, 2
        // Predicated region
        $region61: #{_compute_cost_matrices.1} parent=59 // pred_check
          %p741 = pneg %p205
        $region62: #{_compute_cost_matrices.1} parent=59 // pred_check_branch
          %743 = sbr.rel (%p741) target = $region64
        $region63: #{_compute_cost_matrices.1} parent=59 // pred_region
          %s744 = sand.u32 %s190, 1
          %s745 = scalar_lea.sflag [#allocation5], %s744
          %s746 = sand.u32 %s190, 1
          %s747 = smul.addr %s746, 16
          %s748 = scalar_lea.vmem [#allocation6], %s747
          %749 = dma.done %s745, 256
        $region64: #{_compute_cost_matrices.1} parent=59 // pred_fallthru
          _
      $region60: #{_compute_cost_matrices.1} parent=5 // pred_fallthru
        _
    $region6: #{_compute_cost_matrices.1} parent=1 // loop_footer
      %s21 = sadd.s32 1, %s17
    $region7: #{_compute_cost_matrices.1} parent=1 // loop_footer_branch
      %16 = sbr.rel target = $region3
    $region8: #{_compute_cost_matrices.1} parent=1 // loop_exit
      _
    %750 = vsyncpa [#allocation4], 1
    %s751 = scalar_lea.sflag [#allocation4], 1
    %752 = vsyncpa %s751, 1
    %753 = vsyncpa [#allocation5], 1
    %s754 = scalar_lea.sflag [#allocation5], 1
    %755 = vsyncpa %s754, 1

</llo_original>
